<compile_context>
chip_gen: v5e
topology: v5e:2x2
jax: 0.10.0
libtpu: 0.0.40
codegen_flags: <defaults>
</compile_context>

<pallas_src>
import math

import numpy as np
import jax
import jax.numpy as jnp
from jax import lax
from jax.experimental import pallas as pl
from jax.experimental.pallas import tpu as pltpu

# --- small config (consistent with GPTConfig semantics) ---
B = 2            # batch
T = 16           # sequence length (block_size)
C = 32           # n_embd
N_HEAD = 4
HEAD_DIM = C // N_HEAD
BT = B * T       # folded batch*sequence rows
SBT = N_HEAD * BT  # sublane-stacked rows (one copy per head)
EPS = 1e-5       # nn.LayerNorm default eps

# ---- compile-time constants (numpy, baked at wrapper build time) ----
# Block-diagonal (per-batch) causal mask over the folded rows, as an additive
# bias, tiled once per head along the stacked row axis.
_row = np.arange(BT)[:, None]
_col = np.arange(BT)[None, :]
_causal = ((_row // T) == (_col // T)) & (_col <= _row)
_BIAS = np.where(_causal, 0.0, -1e30).astype(np.float32)          # (BT, BT)
BIAS_STACKED = np.tile(_BIAS, (N_HEAD, 1))                        # (SBT, BT)

# Head-selection mask: stacked block h keeps only head h's lane columns.
HEAD_MASK = np.zeros((SBT, C), np.float32)
for _h in range(N_HEAD):
    HEAD_MASK[_h * BT:(_h + 1) * BT, _h * HEAD_DIM:(_h + 1) * HEAD_DIM] = 1.0


def _layernorm(x):
    # LayerNorm over last dim, no affine (elementwise_affine=False)
    mu = jnp.mean(x, axis=-1, keepdims=True)
    var = jnp.mean((x - mu) * (x - mu), axis=-1, keepdims=True)
    return (x - mu) * lax.rsqrt(var + EPS)


def _gelu_exact(x):
    # nn.GELU() default (approximate='none'): 0.5 * x * (1 + erf(x / sqrt(2)))
    return 0.5 * x * (1.0 + lax.erf(x * (1.0 / math.sqrt(2.0))))


def block_kernel(x_ref, wqkv_ref, wo_ref, wfc_ref, wp_ref, bias_ref, hmask_ref,
                 o_ref):
    x = x_ref[...]                                               # (BT, C)

    # ---- LN1 + causal self-attention (all heads & all B*T rows at once) ----
    ln1 = _layernorm(x)
    qkv = jnp.dot(ln1, wqkv_ref[...],
                  preferred_element_type=jnp.float32)            # (BT, 3C)
    q = qkv[:, 0 * C:1 * C] * jnp.float32(1.0 / math.sqrt(HEAD_DIM))
    k = qkv[:, 1 * C:2 * C]
    v = qkv[:, 2 * C:3 * C]

    hmask = hmask_ref[...]                                       # (SBT, C)

    # Sublane-stack q once per head and zero the other heads' columns, so ONE
    # contraction over full C produces every head's score matrix.
    q_stacked = jnp.concatenate([q] * N_HEAD, axis=0) * hmask    # (SBT, C)

    dn = (((1,), (1,)), ((), ()))                                # contract C on both
    s = lax.dot_general(q_stacked, k, dimension_numbers=dn,
                        preferred_element_type=jnp.float32)      # (SBT, BT)
    s = s + bias_ref[...]                                        # static causal bias

    # One stacked softmax over the key axis.
    m = jnp.max(s, axis=-1, keepdims=True)
    p = jnp.exp(s - m)
    p = p * pl.reciprocal(jnp.sum(p, axis=-1, keepdims=True), approx=True)

    # One stacked P.V matmul; mask keeps head h's columns in stacked block h.
    pv = jnp.dot(p, v, preferred_element_type=jnp.float32) * hmask   # (SBT, C)

    # 3-add sublane fold: disjoint column ranges => this IS concat(heads) (BT, C).
    heads = pv[0:BT]
    for h in range(1, N_HEAD):
        heads = heads + pv[h * BT:(h + 1) * BT]

    att = jnp.dot(heads, wo_ref[...],
                  preferred_element_type=jnp.float32)            # (BT, C)

    x1 = x + att                                                 # residual 1

    # ---- LN2 + MLP ----
    ln2 = _layernorm(x1)
    hdn = jnp.dot(ln2, wfc_ref[...], preferred_element_type=jnp.float32)  # (BT, 4C)
    hdn = _gelu_exact(hdn)
    mlp_out = jnp.dot(hdn, wp_ref[...], preferred_element_type=jnp.float32)
    o_ref[...] = x1 + mlp_out                                    # residual 2


@jax.jit
def gpt_block(x, w_qkv, w_o, w_fc, w_proj2):
    # Weights arrive already transposed to (in_features, out_features).
    b, t, c = x.shape
    x2 = x.reshape(b * t, c)                                     # fold batch into rows
    bias = jnp.asarray(BIAS_STACKED)
    hmask = jnp.asarray(HEAD_MASK)
    out = pl.pallas_call(
        block_kernel,
        out_shape=jax.ShapeDtypeStruct((b * t, c), jnp.float32),
        # Single invocation (no grid); every operand lives fully in VMEM
        # (~80 KiB total, far below any generation's VMEM budget).
        in_specs=[pl.BlockSpec(memory_space=pltpu.MemorySpace.VMEM)] * 7,
        out_specs=pl.BlockSpec(memory_space=pltpu.MemorySpace.VMEM),
        input_output_aliases={0: 0},                             # reuse x's HBM buffer
    )(x2, w_qkv, w_o, w_fc, w_proj2, bias, hmask)
    return out.reshape(b, t, c)


def reference_block(x, w_qkv, w_o, w_fc, w_proj2):
    # Pure-JAX reference mirroring the PyTorch module.
    def ln(z):
        mu = jnp.mean(z, axis=-1, keepdims=True)
        var = jnp.mean((z - mu) ** 2, axis=-1, keepdims=True)
        return (z - mu) / jnp.sqrt(var + EPS)

    ln1 = ln(x)
    qkv = ln1 @ w_qkv                                  # (B, T, 3C)
    q, k, v = jnp.split(qkv, 3, axis=-1)
    q = q.reshape(B, T, N_HEAD, HEAD_DIM).transpose(0, 2, 1, 3)
    k = k.reshape(B, T, N_HEAD, HEAD_DIM).transpose(0, 2, 1, 3)
    v = v.reshape(B, T, N_HEAD, HEAD_DIM).transpose(0, 2, 1, 3)
    s = jnp.einsum("bhqd,bhkd->bhqk", q, k) / math.sqrt(HEAD_DIM)
    mask = jnp.tril(jnp.ones((T, T), bool))
    s = jnp.where(mask, s, -jnp.inf)
    p = jax.nn.softmax(s, axis=-1)
    y = jnp.einsum("bhqk,bhkd->bhqd", p, v)
    y = y.transpose(0, 2, 1, 3).reshape(B, T, C)
    x1 = x + y @ w_o
    ln2 = ln(x1)
    h = ln2 @ w_fc
    h = jax.nn.gelu(h, approximate=False)
    return x1 + h @ w_proj2


if __name__ == "__main__":
    key = jax.random.PRNGKey(0)
    kx, k1, k2, k3, k4 = jax.random.split(key, 5)

    x = jax.random.normal(kx, (B, T, C), dtype=jnp.float32)
    # PyTorch weights would be (out, in); store transposed (in, out) for the kernel.
    w_qkv = 0.02 * jax.random.normal(k1, (C, 3 * C), dtype=jnp.float32)
    w_o = 0.02 * jax.random.normal(k2, (C, C), dtype=jnp.float32)
    w_fc = 0.02 * jax.random.normal(k3, (C, 4 * C), dtype=jnp.float32)
    w_proj2 = 0.02 * jax.random.normal(k4, (4 * C, C), dtype=jnp.float32)

    out = gpt_block(x, w_qkv, w_o, w_fc, w_proj2)
    out = jax.block_until_ready(out)

    ref = reference_block(x, w_qkv, w_o, w_fc, w_proj2)
    assert out.shape == (B, T, C)
    # tolerance loosened slightly for the approx (EUP) softmax reciprocal
    assert jnp.allclose(out, ref, atol=1e-3, rtol=1e-3), "mismatch vs reference"

    print("KERNEL_OK")
</pallas_src>

<mosaic_0001>
module attributes {stable_mosaic.version = 11 : i64} {
  func.func @block_kernel(%arg0: memref<32x32xf32, #tpu.memory_space<vmem>>, %arg1: memref<32x96xf32, #tpu.memory_space<vmem>>, %arg2: memref<32x32xf32, #tpu.memory_space<vmem>>, %arg3: memref<32x128xf32, #tpu.memory_space<vmem>>, %arg4: memref<128x32xf32, #tpu.memory_space<vmem>>, %arg5: memref<128x32xf32, #tpu.memory_space<vmem>>, %arg6: memref<128x32xf32, #tpu.memory_space<vmem>>, %arg7: memref<32x32xf32, #tpu.memory_space<vmem>>) attributes {dimension_semantics = [], scalar_prefetch = 0 : i64, scratch_operands = 0 : i64, tpu.core_type = #tpu.core_type<tc>} {
    %c0 = arith.constant 0 : index
    %c0_0 = arith.constant 0 : index
    %0 = vector.load %arg0[%c0, %c0_0] : memref<32x32xf32, #tpu.memory_space<vmem>>, vector<32x32xf32>
    %cst = arith.constant dense<0.000000e+00> : vector<32xf32>
    %1 = vector.multi_reduction <add>, %0, %cst [1] : vector<32x32xf32> to vector<32xf32>
    %2 = vector.shape_cast %1 : vector<32xf32> to vector<32x1xf32>
    %cst_1 = arith.constant 3.200000e+01 : f32
    %3 = vector.broadcast %cst_1 : f32 to vector<32x1xf32>
    %4 = arith.divf %2, %3 : vector<32x1xf32>
    %5 = vector.broadcast %4 : vector<32x1xf32> to vector<32x32xf32>
    %6 = arith.subf %0, %5 : vector<32x32xf32>
    %7 = vector.broadcast %4 : vector<32x1xf32> to vector<32x32xf32>
    %8 = arith.subf %0, %7 : vector<32x32xf32>
    %9 = arith.mulf %6, %8 : vector<32x32xf32>
    %cst_2 = arith.constant dense<0.000000e+00> : vector<32xf32>
    %10 = vector.multi_reduction <add>, %9, %cst_2 [1] : vector<32x32xf32> to vector<32xf32>
    %11 = vector.shape_cast %10 : vector<32xf32> to vector<32x1xf32>
    %cst_3 = arith.constant 3.200000e+01 : f32
    %12 = vector.broadcast %cst_3 : f32 to vector<32x1xf32>
    %13 = arith.divf %11, %12 : vector<32x1xf32>
    %14 = vector.broadcast %4 : vector<32x1xf32> to vector<32x32xf32>
    %15 = arith.subf %0, %14 : vector<32x32xf32>
    %cst_4 = arith.constant 9.99999974E-6 : f32
    %16 = vector.broadcast %cst_4 : f32 to vector<32x1xf32>
    %17 = arith.addf %13, %16 : vector<32x1xf32>
    %18 = math.rsqrt %17 : vector<32x1xf32>
    %19 = vector.broadcast %18 : vector<32x1xf32> to vector<32x32xf32>
    %20 = arith.mulf %15, %19 : vector<32x32xf32>
    %c0_5 = arith.constant 0 : index
    %c0_6 = arith.constant 0 : index
    %21 = vector.load %arg1[%c0_5, %c0_6] : memref<32x96xf32, #tpu.memory_space<vmem>>, vector<32x96xf32>
    %cst_7 = arith.constant dense<0.000000e+00> : vector<32x96xf32>
    %22 = tpu.matmul %20, %21, %cst_7 {dimension_numbers = #tpu.dot_dimension_numbers<[1], [0], [0], [1], [0, 0, 1, 1], [], []>} : vector<32x32xf32>, vector<32x96xf32>, vector<32x96xf32> -> vector<32x96xf32>
    %23 = vector.extract_strided_slice %22 {offsets = [0, 0], sizes = [32, 32], strides = [1, 1]} : vector<32x96xf32> to vector<32x32xf32>
    %cst_8 = arith.constant 0.353553385 : f32
    %24 = vector.broadcast %cst_8 : f32 to vector<32x32xf32>
    %25 = arith.mulf %23, %24 : vector<32x32xf32>
    %26 = vector.extract_strided_slice %22 {offsets = [0, 32], sizes = [32, 32], strides = [1, 1]} : vector<32x96xf32> to vector<32x32xf32>
    %27 = vector.extract_strided_slice %22 {offsets = [0, 64], sizes = [32, 32], strides = [1, 1]} : vector<32x96xf32> to vector<32x32xf32>
    %c0_9 = arith.constant 0 : index
    %c0_10 = arith.constant 0 : index
    %28 = vector.load %arg6[%c0_9, %c0_10] : memref<128x32xf32, #tpu.memory_space<vmem>>, vector<128x32xf32>
    %29 = tpu.concatenate %25, %25, %25, %25 in 0 : vector<32x32xf32>, vector<32x32xf32>, vector<32x32xf32>, vector<32x32xf32> -> vector<128x32xf32>
    %30 = arith.mulf %29, %28 : vector<128x32xf32>
    %cst_11 = arith.constant dense<0.000000e+00> : vector<128x32xf32>
    %31 = tpu.matmul %30, %26, %cst_11 {dimension_numbers = #tpu.dot_dimension_numbers<[1], [1], [0], [0], [0, 0, 1, 0], [], []>} : vector<128x32xf32>, vector<32x32xf32>, vector<128x32xf32> -> vector<128x32xf32>
    %c0_12 = arith.constant 0 : index
    %c0_13 = arith.constant 0 : index
    %32 = vector.load %arg5[%c0_12, %c0_13] : memref<128x32xf32, #tpu.memory_space<vmem>>, vector<128x32xf32>
    %33 = arith.addf %31, %32 : vector<128x32xf32>
    %cst_14 = arith.constant dense<0xFF800000> : vector<128xf32>
    %34 = vector.multi_reduction <maximumf>, %33, %cst_14 [1] : vector<128x32xf32> to vector<128xf32>
    %35 = vector.shape_cast %34 : vector<128xf32> to vector<128x1xf32>
    %36 = vector.broadcast %35 : vector<128x1xf32> to vector<128x32xf32>
    %37 = arith.subf %33, %36 : vector<128x32xf32>
    %38 = math.exp %37 : vector<128x32xf32>
    %cst_15 = arith.constant dense<0.000000e+00> : vector<128xf32>
    %39 = vector.multi_reduction <add>, %38, %cst_15 [1] : vector<128x32xf32> to vector<128xf32>
    %40 = vector.shape_cast %39 : vector<128xf32> to vector<128x1xf32>
    %41 = tpu.reciprocal %40 {approx = true} : vector<128x1xf32> -> vector<128x1xf32>
    %42 = vector.broadcast %41 : vector<128x1xf32> to vector<128x32xf32>
    %43 = arith.mulf %38, %42 : vector<128x32xf32>
    %cst_16 = arith.constant dense<0.000000e+00> : vector<128x32xf32>
    %44 = tpu.matmul %43, %27, %cst_16 {dimension_numbers = #tpu.dot_dimension_numbers<[1], [0], [0], [1], [0, 0, 1, 1], [], []>} : vector<128x32xf32>, vector<32x32xf32>, vector<128x32xf32> -> vector<128x32xf32>
    %45 = arith.mulf %44, %28 : vector<128x32xf32>
    %46 = vector.extract_strided_slice %45 {offsets = [0, 0], sizes = [32, 32], strides = [1, 1]} : vector<128x32xf32> to vector<32x32xf32>
    %47 = vector.extract_strided_slice %45 {offsets = [32, 0], sizes = [32, 32], strides = [1, 1]} : vector<128x32xf32> to vector<32x32xf32>
    %48 = arith.addf %46, %47 : vector<32x32xf32>
    %49 = vector.extract_strided_slice %45 {offsets = [64, 0], sizes = [32, 32], strides = [1, 1]} : vector<128x32xf32> to vector<32x32xf32>
    %50 = arith.addf %48, %49 : vector<32x32xf32>
    %51 = vector.extract_strided_slice %45 {offsets = [96, 0], sizes = [32, 32], strides = [1, 1]} : vector<128x32xf32> to vector<32x32xf32>
    %52 = arith.addf %50, %51 : vector<32x32xf32>
    %c0_17 = arith.constant 0 : index
    %c0_18 = arith.constant 0 : index
    %53 = vector.load %arg2[%c0_17, %c0_18] : memref<32x32xf32, #tpu.memory_space<vmem>>, vector<32x32xf32>
    %cst_19 = arith.constant dense<0.000000e+00> : vector<32x32xf32>
    %54 = tpu.matmul %52, %53, %cst_19 {dimension_numbers = #tpu.dot_dimension_numbers<[1], [0], [0], [1], [0, 0, 1, 1], [], []>} : vector<32x32xf32>, vector<32x32xf32>, vector<32x32xf32> -> vector<32x32xf32>
    %55 = arith.addf %0, %54 : vector<32x32xf32>
    %cst_20 = arith.constant dense<0.000000e+00> : vector<32xf32>
    %56 = vector.multi_reduction <add>, %55, %cst_20 [1] : vector<32x32xf32> to vector<32xf32>
    %57 = vector.shape_cast %56 : vector<32xf32> to vector<32x1xf32>
    %cst_21 = arith.constant 3.200000e+01 : f32
    %58 = vector.broadcast %cst_21 : f32 to vector<32x1xf32>
    %59 = arith.divf %57, %58 : vector<32x1xf32>
    %60 = vector.broadcast %59 : vector<32x1xf32> to vector<32x32xf32>
    %61 = arith.subf %55, %60 : vector<32x32xf32>
    %62 = vector.broadcast %59 : vector<32x1xf32> to vector<32x32xf32>
    %63 = arith.subf %55, %62 : vector<32x32xf32>
    %64 = arith.mulf %61, %63 : vector<32x32xf32>
    %cst_22 = arith.constant dense<0.000000e+00> : vector<32xf32>
    %65 = vector.multi_reduction <add>, %64, %cst_22 [1] : vector<32x32xf32> to vector<32xf32>
    %66 = vector.shape_cast %65 : vector<32xf32> to vector<32x1xf32>
    %cst_23 = arith.constant 3.200000e+01 : f32
    %67 = vector.broadcast %cst_23 : f32 to vector<32x1xf32>
    %68 = arith.divf %66, %67 : vector<32x1xf32>
    %69 = vector.broadcast %59 : vector<32x1xf32> to vector<32x32xf32>
    %70 = arith.subf %55, %69 : vector<32x32xf32>
    %cst_24 = arith.constant 9.99999974E-6 : f32
    %71 = vector.broadcast %cst_24 : f32 to vector<32x1xf32>
    %72 = arith.addf %68, %71 : vector<32x1xf32>
    %73 = math.rsqrt %72 : vector<32x1xf32>
    %74 = vector.broadcast %73 : vector<32x1xf32> to vector<32x32xf32>
    %75 = arith.mulf %70, %74 : vector<32x32xf32>
    %c0_25 = arith.constant 0 : index
    %c0_26 = arith.constant 0 : index
    %76 = vector.load %arg3[%c0_25, %c0_26] : memref<32x128xf32, #tpu.memory_space<vmem>>, vector<32x128xf32>
    %cst_27 = arith.constant dense<0.000000e+00> : vector<32x128xf32>
    %77 = tpu.matmul %75, %76, %cst_27 {dimension_numbers = #tpu.dot_dimension_numbers<[1], [0], [0], [1], [0, 0, 1, 1], [], []>} : vector<32x32xf32>, vector<32x128xf32>, vector<32x128xf32> -> vector<32x128xf32>
    %cst_28 = arith.constant 5.000000e-01 : f32
    %78 = vector.broadcast %cst_28 : f32 to vector<32x128xf32>
    %79 = arith.mulf %78, %77 : vector<32x128xf32>
    %cst_29 = arith.constant 0.707106769 : f32
    %80 = vector.broadcast %cst_29 : f32 to vector<32x128xf32>
    %81 = arith.mulf %77, %80 : vector<32x128xf32>
    %82 = math.erf %81 : vector<32x128xf32>
    %cst_30 = arith.constant 1.000000e+00 : f32
    %83 = vector.broadcast %cst_30 : f32 to vector<32x128xf32>
    %84 = arith.addf %83, %82 : vector<32x128xf32>
    %85 = arith.mulf %79, %84 : vector<32x128xf32>
    %c0_31 = arith.constant 0 : index
    %c0_32 = arith.constant 0 : index
    %86 = vector.load %arg4[%c0_31, %c0_32] : memref<128x32xf32, #tpu.memory_space<vmem>>, vector<128x32xf32>
    %cst_33 = arith.constant dense<0.000000e+00> : vector<32x32xf32>
    %87 = tpu.matmul %85, %86, %cst_33 {dimension_numbers = #tpu.dot_dimension_numbers<[1], [0], [0], [1], [0, 0, 1, 1], [], []>} : vector<32x128xf32>, vector<128x32xf32>, vector<32x32xf32> -> vector<32x32xf32>
    %88 = arith.addf %55, %87 : vector<32x32xf32>
    %c0_34 = arith.constant 0 : index
    %c0_35 = arith.constant 0 : index
    %89 = vector.load %arg7[%c0_34, %c0_35] : memref<32x32xf32, #tpu.memory_space<vmem>>, vector<32x32xf32>
    tpu.vector_store %arg7[%c0_34, %c0_35], %88 {strides = array<i32>} : memref<32x32xf32, #tpu.memory_space<vmem>>, vector<32x32xf32>,
    return
  }
}

</mosaic_0001>

<llo_original>
// kernel: gpt_block.1
$region0: #{gpt_block.1}
  #allocation0 [shape = 'u32[]', space=smem, size = 0x4, offset = 0x4, fixed_abs, tag = 'smem constant byte address 0x4 - core index']
  #allocation1 [shape = 'u32[72,128]{1,0:T(1,128)}', space=vmem, size = 0x9000, scoped, tag = 'internal scratch']
  %s0 = inlined_call_operand.vmem [shape: f32[32,32], index: 0, kind: input, shape index: {}, may-alias: {0,7}]
  %s1 = inlined_call_operand.vmem [shape: f32[32,96], index: 1, kind: input, shape index: {}]
  %s2 = inlined_call_operand.hbm [shape: f32[32,32], index: 2, kind: input, shape index: {}]
  %s3 = inlined_call_operand.hbm [shape: f32[32,128], index: 3, kind: input, shape index: {}]
  %s4 = inlined_call_operand.vmem [shape: f32[128,32], index: 4, kind: input, shape index: {}]
  %s5 = inlined_call_operand.hbm [shape: f32[128,32], index: 5, kind: input, shape index: {}]
  %s6 = inlined_call_operand.vmem [shape: f32[128,32], index: 6, kind: input, shape index: {}]
  %s7 = inlined_call_operand.vmem [shape: f32[32,32], index: 7, kind: output, shape index: {}, may-alias: {0,7}]
  %s8 = sld [smem:[#allocation0]]
  $region50: #{gpt_block.1} parent=0
    _
  %s10 = ssub.s32 1, %s8
  %s11 = scalar_select 0, %s10, %s8
  $region1: #{gpt_block.1} parent=0
    #allocation2 [shape = 'u8[16384]{0}', space=vmem, size = 0x4000, scoped, tag = 'input window, operand 2, single buffered']
    #allocation3 [shape = 's32[1]{0}', space=sflag, size = 0x4, scoped, tag = 'scoped memory for gpt_block.1']
    #allocation4 [shape = 'u8[16384]{0}', space=vmem, size = 0x4000, scoped, tag = 'input window, operand 3, single buffered']
    #allocation5 [shape = 's32[1]{0}', space=sflag, size = 0x4, scoped, tag = 'scoped memory for gpt_block.1']
    #allocation6 [shape = 'u8[65536]{0}', space=vmem, size = 0x10000, scoped, tag = 'input window, operand 5, single buffered']
    %12 = vsyncpa [#allocation3], 0
    %13 = vsyncpa [#allocation5], 0
    // Predicated region
    $region2: #{gpt_block.1} parent=1 // pred_check
      _
    $region3: #{gpt_block.1} parent=1 // pred_check_branch
      %15 = sbr.rel (0) target = $region5
    $region4: #{gpt_block.1} parent=1 // pred_region
      _
    $region5: #{gpt_block.1} parent=1 // pred_fallthru
      _
    // Predicated region
    $region6: #{gpt_block.1} parent=1 // pred_check
      _
    $region7: #{gpt_block.1} parent=1 // pred_check_branch
      %17 = sbr.rel (0) target = $region9
    $region8: #{gpt_block.1} parent=1 // pred_region
      _
    $region9: #{gpt_block.1} parent=1 // pred_fallthru
      _
    // Predicated region
    $region10: #{gpt_block.1} parent=1 // pred_check
      _
    $region11: #{gpt_block.1} parent=1 // pred_check_branch
      %19 = sbr.rel (0) target = $region13
    $region12: #{gpt_block.1} parent=1 // pred_region
      %21 = vsyncadd [#allocation3], 0
      %s22 = sshll.u32 %s2, 4
      %s23 = int_to_ptr.hbm [resolvable:$true] %s22
      %s24 = sshll.u32 [#allocation2], 4
      %s25 = int_to_ptr.vmem [resolvable:$true] %s24
      %30 = dma.hbm_to_vmem [thread:$0]  %s23, 512, %s25, [#allocation3], 128, 128, 8
    $region13: #{gpt_block.1} parent=1 // pred_fallthru
      _
    // Predicated region
    $region14: #{gpt_block.1} parent=1 // pred_check
      _
    $region15: #{gpt_block.1} parent=1 // pred_check_branch
      %32 = sbr.rel (0) target = $region17
    $region16: #{gpt_block.1} parent=1 // pred_region
      %34 = vsyncadd [#allocation5], 0
      %s35 = sshll.u32 %s3, 4
      %s36 = int_to_ptr.hbm [resolvable:$true] %s35
      %s37 = sshll.u32 [#allocation4], 4
      %s38 = int_to_ptr.vmem [resolvable:$true] %s37
      %43 = dma.hbm_to_vmem [thread:$0]  %s36, 512, %s38, [#allocation5], 128, 128, 8
    $region17: #{gpt_block.1} parent=1 // pred_fallthru
      _
    // Predicated region
    $region18: #{gpt_block.1} parent=1 // pred_check
      _
    $region19: #{gpt_block.1} parent=1 // pred_check_branch
      %45 = sbr.rel (0) target = $region21
    $region20: #{gpt_block.1} parent=1 // pred_region
      _
    $region21: #{gpt_block.1} parent=1 // pred_fallthru
      _
    // Predicated region
    $region22: #{gpt_block.1} parent=1 // pred_check
      _
    $region23: #{gpt_block.1} parent=1 // pred_check_branch
      %47 = sbr.rel (0) target = $region25
    $region24: #{gpt_block.1} parent=1 // pred_region
      %49 = vsyncadd [#allocation5], 0
      %s50 = sshll.u32 %s5, 4
      %s51 = int_to_ptr.hbm [resolvable:$true] %s50
      %s52 = sshll.u32 [#allocation6], 4
      %s53 = int_to_ptr.vmem [resolvable:$true] %s52
      %58 = dma.hbm_to_vmem [thread:$0]  %s51, 2048, %s53, [#allocation5], 128, 128, 8
    $region25: #{gpt_block.1} parent=1 // pred_fallthru
      _
    // Predicated region
    $region26: #{gpt_block.1} parent=1 // pred_check
      _
    $region27: #{gpt_block.1} parent=1 // pred_check_branch
      %60 = sbr.rel (0) target = $region29
    $region28: #{gpt_block.1} parent=1 // pred_region
      _
    $region29: #{gpt_block.1} parent=1 // pred_fallthru
      _
    // Predicated region
    $region30: #{gpt_block.1} parent=1 // pred_check
      _
    $region31: #{gpt_block.1} parent=1 // pred_check_branch
      %62 = sbr.rel (0) target = $region33
    $region32: #{gpt_block.1} parent=1 // pred_region
      %64 = dma.done [#allocation3], 512
    $region33: #{gpt_block.1} parent=1 // pred_fallthru
      _
    // Predicated region
    $region34: #{gpt_block.1} parent=1 // pred_check
      _
    $region35: #{gpt_block.1} parent=1 // pred_check_branch
      %66 = sbr.rel (0) target = $region37
    $region36: #{gpt_block.1} parent=1 // pred_region
      %68 = dma.done [#allocation5], 512
    $region37: #{gpt_block.1} parent=1 // pred_fallthru
      _
    // Predicated region
    $region38: #{gpt_block.1} parent=1 // pred_check
      _
    $region39: #{gpt_block.1} parent=1 // pred_check_branch
      %70 = sbr.rel (0) target = $region41
    $region40: #{gpt_block.1} parent=1 // pred_region
      %72 = dma.done [#allocation5], 2048
    $region41: #{gpt_block.1} parent=1 // pred_fallthru
      _
    %v73 = vld [vmem:[%s0] sm:$0xff]
    %v74 = vld [vmem:[%s0 + $0x8] sm:$0xff]
    %v75 = vld [vmem:[%s0 + $0x10] sm:$0xff]
    %v76 = vld [vmem:[%s0 + $0x18] sm:$0xff]
    %vm77 = vcmask 261120
    %v78 = vsel %vm77, %v73, 0.0
    %79 = vadd.xlane.f32.xlu0 %v78
    %v80 = vpop.xlane.xlu0 %79
    %v81 = vsel %vm77, %v74, 0.0
    %82 = vadd.xlane.f32.xlu0 %v81
    %v83 = vpop.xlane.xlu0 %82
    %v84 = vsel %vm77, %v75, 0.0
    %85 = vadd.xlane.f32.xlu0 %v84
    %v86 = vpop.xlane.xlu0 %85
    %v87 = vsel %vm77, %v76, 0.0
    %88 = vadd.xlane.f32.xlu0 %v87
    %v89 = vpop.xlane.xlu0 %88
    %v90 = vrcp.pop 32.0
    %v91 = vmul.f32 32.0, %v90
    %v92 = vsub.f32 1.0, %v91
    %v93 = vmul.f32 %v90, %v92
    %v94 = vadd.f32 %v90, %v93
    %vm95 = vweird.f32 %v90
    %v96 = vsel %vm95, %v90, %v94
    %v97 = vmul.f32 %v80, %v96
    %v98 = vmul.f32 %v83, %v96
    %v99 = vmul.f32 %v86, %v96
    %v100 = vmul.f32 %v89, %v96
    %v101 = vsub.f32 %v73, %v97
    %v102 = vsub.f32 %v74, %v98
    %v103 = vsub.f32 %v75, %v99
    %v104 = vsub.f32 %v76, %v100
    %v105 = vmul.f32 %v101, %v101
    %v106 = vmul.f32 %v102, %v102
    %v107 = vmul.f32 %v103, %v103
    %v108 = vmul.f32 %v104, %v104
    %v109 = vsel %vm77, %v105, 0.0
    %110 = vadd.xlane.f32.xlu0 %v109
    %v111 = vpop.xlane.xlu0 %110
    %v112 = vsel %vm77, %v106, 0.0
    %113 = vadd.xlane.f32.xlu0 %v112
    %v114 = vpop.xlane.xlu0 %113
    %v115 = vsel %vm77, %v107, 0.0
    %116 = vadd.xlane.f32.xlu0 %v115
    %v117 = vpop.xlane.xlu0 %116
    %v118 = vsel %vm77, %v108, 0.0
    %119 = vadd.xlane.f32.xlu0 %v118
    %v120 = vpop.xlane.xlu0 %119
    %v121 = vmul.f32 %v111, %v96
    %v122 = vmul.f32 %v114, %v96
    %v123 = vmul.f32 %v117, %v96
    %v124 = vmul.f32 %v120, %v96
    %v125 = vadd.f32 %v121, 1e-05
    %v126 = vadd.f32 %v122, 1e-05
    %v127 = vadd.f32 %v123, 1e-05
    %v128 = vadd.f32 %v124, 1e-05
    %v129 = vrsqrt.pop %v125
    %v130 = vmul.f32 %v129, %v125
    %v131 = vmul.f32 %v130, %v129
    %v132 = vmul.f32 0.5, %v131
    %v133 = vsub.f32 1.5, %v132
    %v134 = vmul.f32 %v129, %v133
    %vm135 = vweird.f32 %v125
    %vm136 = vweird.f32 %v129
    %vm137 = vmor %vm135, %vm136
    %v138 = vsel %vm137, %v129, %v134
    %v139 = vrsqrt.pop %v126
    %v140 = vmul.f32 %v139, %v126
    %v141 = vmul.f32 %v140, %v139
    %v142 = vmul.f32 0.5, %v141
    %v143 = vsub.f32 1.5, %v142
    %v144 = vmul.f32 %v139, %v143
    %vm145 = vweird.f32 %v126
    %vm146 = vweird.f32 %v139
    %vm147 = vmor %vm145, %vm146
    %v148 = vsel %vm147, %v139, %v144
    %v149 = vrsqrt.pop %v127
    %v150 = vmul.f32 %v149, %v127
    %v151 = vmul.f32 %v150, %v149
    %v152 = vmul.f32 0.5, %v151
    %v153 = vsub.f32 1.5, %v152
    %v154 = vmul.f32 %v149, %v153
    %vm155 = vweird.f32 %v127
    %vm156 = vweird.f32 %v149
    %vm157 = vmor %vm155, %vm156
    %v158 = vsel %vm157, %v149, %v154
    %v159 = vrsqrt.pop %v128
    %v160 = vmul.f32 %v159, %v128
    %v161 = vmul.f32 %v160, %v159
    %v162 = vmul.f32 0.5, %v161
    %v163 = vsub.f32 1.5, %v162
    %v164 = vmul.f32 %v159, %v163
    %vm165 = vweird.f32 %v128
    %vm166 = vweird.f32 %v159
    %vm167 = vmor %vm165, %vm166
    %v168 = vsel %vm167, %v159, %v164
    %v169 = vmul.f32 %v101, %v138
    %v170 = vmul.f32 %v102, %v148
    %v171 = vmul.f32 %v103, %v158
    %v172 = vmul.f32 %v104, %v168
    %v173 = vld [vmem:[%s1] sm:$0xff]
    %v174 = vld [vmem:[%s1 + $0x8] sm:$0xff]
    %v175 = vld [vmem:[%s1 + $0x10] sm:$0xff]
    %v176 = vld [vmem:[%s1 + $0x18] sm:$0xff]
    %v178 = vsel %vm77, %v169, 0
    %v181 = vsel %vm77, %v170, 0
    %v184 = vsel %vm77, %v171, 0
    %v187 = vsel %vm77, %v172, 0
    %189 = vmatpush.msra.mxu0 0.0
    %190 = vmatpush.msra.mxu0 0.0
    %191 = vmatpush.msra.mxu0 0.0
    %192 = vmatpush.msra.mxu0 0.0
    %193 = vmatpush.msra.mxu0 0.0
    %194 = vmatpush.msra.mxu0 0.0
    %195 = vmatpush.msra.mxu0 0.0
    %196 = vmatpush.msra.mxu0 0.0
    %197 = vmatpush.msra.mxu0 0.0
    %198 = vmatpush.msra.mxu0 0.0
    %199 = vmatpush.msra.mxu0 0.0
    %200 = vmatpush.msra.mxu0 0.0
    %201 = vmatpush.msra.mxu0 %v176
    %202 = vmatpush.msra.mxu0 %v175
    %203 = vmatpush.msra.mxu0 %v174
    %204 = vmatpush.msra.mxu0 %v173
    %205 = vmatmul.f32.gmra.mxu0 %v178
    %v206 = vpop.f32.mrf.mxu0
    %v207 = vadd.f32 0.0, %v206
    %208 = vmatmul.f32.gmra.mxu0 %v181
    %v209 = vpop.f32.mrf.mxu0
    %v210 = vadd.f32 0.0, %v209
    %211 = vmatmul.f32.gmra.mxu0 %v184
    %v212 = vpop.f32.mrf.mxu0
    %v213 = vadd.f32 0.0, %v212
    %214 = vmatmul.f32.gmra.mxu0 %v187
    %v215 = vpop.f32.mrf.mxu0
    %v216 = vadd.f32 0.0, %v215
    %217 = vdwg.mxu0
    %v218 = vmul.f32 %v207, 0.35355338
    %v219 = vmul.f32 %v210, 0.35355338
    %v220 = vmul.f32 %v213, 0.35355338
    %v221 = vmul.f32 %v216, 0.35355338
    %v222 = vld [vmem:[%s6] sm:$0xff]
    %v223 = vld [vmem:[%s6 + $0x8] sm:$0xff]
    %v224 = vld [vmem:[%s6 + $0x10] sm:$0xff]
    %v225 = vld [vmem:[%s6 + $0x18] sm:$0xff]
    %v226 = vld [vmem:[%s6 + $0x20] sm:$0xff]
    %v227 = vld [vmem:[%s6 + $0x28] sm:$0xff]
    %v228 = vld [vmem:[%s6 + $0x30] sm:$0xff]
    %v229 = vld [vmem:[%s6 + $0x38] sm:$0xff]
    %v230 = vld [vmem:[%s6 + $0x40] sm:$0xff]
    %v231 = vld [vmem:[%s6 + $0x48] sm:$0xff]
    %v232 = vld [vmem:[%s6 + $0x50] sm:$0xff]
    %v233 = vld [vmem:[%s6 + $0x58] sm:$0xff]
    %v234 = vld [vmem:[%s6 + $0x60] sm:$0xff]
    %v235 = vld [vmem:[%s6 + $0x68] sm:$0xff]
    %v236 = vld [vmem:[%s6 + $0x70] sm:$0xff]
    %v237 = vld [vmem:[%s6 + $0x78] sm:$0xff]
    %v238 = vmul.f32 %v218, %v222
    %v239 = vmul.f32 %v219, %v223
    %v240 = vmul.f32 %v220, %v224
    %v241 = vmul.f32 %v221, %v225
    %v242 = vmul.f32 %v218, %v226
    %v243 = vmul.f32 %v219, %v227
    %v244 = vmul.f32 %v220, %v228
    %v245 = vmul.f32 %v221, %v229
    %v246 = vmul.f32 %v218, %v230
    %v247 = vmul.f32 %v219, %v231
    %v248 = vmul.f32 %v220, %v232
    %v249 = vmul.f32 %v221, %v233
    %v250 = vmul.f32 %v218, %v234
    %v251 = vmul.f32 %v219, %v235
    %v252 = vmul.f32 %v220, %v236
    %v253 = vmul.f32 %v221, %v237
    %v254 = vld [vmem:[#allocation6] sm:$0xff]
    %v255 = vld [vmem:[#allocation6 + $0x8] sm:$0xff]
    %v256 = vld [vmem:[#allocation6 + $0x10] sm:$0xff]
    %v257 = vld [vmem:[#allocation6 + $0x18] sm:$0xff]
    %v258 = vld [vmem:[#allocation6 + $0x20] sm:$0xff]
    %v259 = vld [vmem:[#allocation6 + $0x28] sm:$0xff]
    %v260 = vld [vmem:[#allocation6 + $0x30] sm:$0xff]
    %v261 = vld [vmem:[#allocation6 + $0x38] sm:$0xff]
    %v262 = vld [vmem:[#allocation6 + $0x40] sm:$0xff]
    %v263 = vld [vmem:[#allocation6 + $0x48] sm:$0xff]
    %v264 = vld [vmem:[#allocation6 + $0x50] sm:$0xff]
    %v265 = vld [vmem:[#allocation6 + $0x58] sm:$0xff]
    %v266 = vld [vmem:[#allocation6 + $0x60] sm:$0xff]
    %v267 = vld [vmem:[#allocation6 + $0x68] sm:$0xff]
    %v268 = vld [vmem:[#allocation6 + $0x70] sm:$0xff]
    %v269 = vld [vmem:[#allocation6 + $0x78] sm:$0xff]
    %274 = vrot.lane.b32.xlu0 %v207, 96
    %v275 = vpop.permute.xlu0 %274
    %276 = vrot.lane.b32.xlu0 %v210, 96
    %v277 = vpop.permute.xlu0 %276
    %278 = vrot.lane.b32.xlu0 %v213, 96
    %v279 = vpop.permute.xlu0 %278
    %280 = vrot.lane.b32.xlu0 %v216, 96
    %v281 = vpop.permute.xlu0 %280
    %v283 = vsel %vm77, %v238, 0
    %v286 = vsel %vm77, %v239, 0
    %v289 = vsel %vm77, %v240, 0
    %v292 = vsel %vm77, %v241, 0
    %v295 = vsel %vm77, %v242, 0
    %v298 = vsel %vm77, %v243, 0
    %v301 = vsel %vm77, %v244, 0
    %v304 = vsel %vm77, %v245, 0
    %v307 = vsel %vm77, %v246, 0
    %v310 = vsel %vm77, %v247, 0
    %v313 = vsel %vm77, %v248, 0
    %v316 = vsel %vm77, %v249, 0
    %v319 = vsel %vm77, %v250, 0
    %v322 = vsel %vm77, %v251, 0
    %v325 = vsel %vm77, %v252, 0
    %v328 = vsel %vm77, %v253, 0
    %v330 = vsel %vm77, %v275, 0
    %v332 = vsel %vm77, %v277, 0
    %v334 = vsel %vm77, %v279, 0
    %v336 = vsel %vm77, %v281, 0
    %338 = vmatpush.xpose.msra.mxu0 0.0
    %339 = vmatpush.xpose.msra.mxu0 0.0
    %340 = vmatpush.xpose.msra.mxu0 0.0
    %341 = vmatpush.xpose.msra.mxu0 0.0
    %342 = vmatpush.xpose.msra.mxu0 0.0
    %343 = vmatpush.xpose.msra.mxu0 0.0
    %344 = vmatpush.xpose.msra.mxu0 0.0
    %345 = vmatpush.xpose.msra.mxu0 0.0
    %346 = vmatpush.xpose.msra.mxu0 0.0
    %347 = vmatpush.xpose.msra.mxu0 0.0
    %348 = vmatpush.xpose.msra.mxu0 0.0
    %349 = vmatpush.xpose.msra.mxu0 0.0
    %350 = vmatpush.xpose.msra.mxu0 %v336
    %351 = vmatpush.xpose.msra.mxu0 %v334
    %352 = vmatpush.xpose.msra.mxu0 %v332
    %353 = vmatpush.xpose.msra.mxu0 %v330
    %354 = vmatmul.f32.gmra.mxu0 %v283
    %v355 = vpop.f32.mrf.mxu0
    %v356 = vadd.f32 %v254, %v355
    %357 = vmatmul.f32.gmra.mxu0 %v286
    %v358 = vpop.f32.mrf.mxu0
    %v359 = vadd.f32 %v255, %v358
    %360 = vmatmul.f32.gmra.mxu0 %v289
    %v361 = vpop.f32.mrf.mxu0
    %v362 = vadd.f32 %v256, %v361
    %363 = vmatmul.f32.gmra.mxu0 %v292
    %v364 = vpop.f32.mrf.mxu0
    %v365 = vadd.f32 %v257, %v364
    %366 = vmatmul.f32.gmra.mxu0 %v295
    %v367 = vpop.f32.mrf.mxu0
    %v368 = vadd.f32 %v258, %v367
    %369 = vmatmul.f32.gmra.mxu0 %v298
    %v370 = vpop.f32.mrf.mxu0
    %v371 = vadd.f32 %v259, %v370
    %372 = vmatmul.f32.gmra.mxu0 %v301
    %v373 = vpop.f32.mrf.mxu0
    %v374 = vadd.f32 %v260, %v373
    %375 = vmatmul.f32.gmra.mxu0 %v304
    %v376 = vpop.f32.mrf.mxu0
    %v377 = vadd.f32 %v261, %v376
    %378 = vmatmul.f32.gmra.mxu0 %v307
    %v379 = vpop.f32.mrf.mxu0
    %v380 = vadd.f32 %v262, %v379
    %381 = vmatmul.f32.gmra.mxu0 %v310
    %v382 = vpop.f32.mrf.mxu0
    %v383 = vadd.f32 %v263, %v382
    %384 = vmatmul.f32.gmra.mxu0 %v313
    %v385 = vpop.f32.mrf.mxu0
    %v386 = vadd.f32 %v264, %v385
    %387 = vmatmul.f32.gmra.mxu0 %v316
    %v388 = vpop.f32.mrf.mxu0
    %v389 = vadd.f32 %v265, %v388
    %390 = vmatmul.f32.gmra.mxu0 %v319
    %v391 = vpop.f32.mrf.mxu0
    %v392 = vadd.f32 %v266, %v391
    %393 = vmatmul.f32.gmra.mxu0 %v322
    %v394 = vpop.f32.mrf.mxu0
    %v395 = vadd.f32 %v267, %v394
    %396 = vmatmul.f32.gmra.mxu0 %v325
    %v397 = vpop.f32.mrf.mxu0
    %v398 = vadd.f32 %v268, %v397
    %399 = vmatmul.f32.gmra.mxu0 %v328
    %v400 = vpop.f32.mrf.mxu0
    %v401 = vadd.f32 %v269, %v400
    %402 = vdwg.mxu0
    %v403 = vsel %vm77, %v356, -inf
    %404 = vmax.xlane.f32.xlu0 %v403
    %v405 = vpop.xlane.xlu0 %404
    %v406 = vsel %vm77, %v359, -inf
    %407 = vmax.xlane.f32.xlu0 %v406
    %v408 = vpop.xlane.xlu0 %407
    %v409 = vsel %vm77, %v362, -inf
    %410 = vmax.xlane.f32.xlu0 %v409
    %v411 = vpop.xlane.xlu0 %410
    %v412 = vsel %vm77, %v365, -inf
    %413 = vmax.xlane.f32.xlu0 %v412
    %v414 = vpop.xlane.xlu0 %413
    %v415 = vsel %vm77, %v368, -inf
    %416 = vmax.xlane.f32.xlu0 %v415
    %v417 = vpop.xlane.xlu0 %416
    %v418 = vsel %vm77, %v371, -inf
    %419 = vmax.xlane.f32.xlu0 %v418
    %v420 = vpop.xlane.xlu0 %419
    %v421 = vsel %vm77, %v374, -inf
    %422 = vmax.xlane.f32.xlu0 %v421
    %v423 = vpop.xlane.xlu0 %422
    %v424 = vsel %vm77, %v377, -inf
    %425 = vmax.xlane.f32.xlu0 %v424
    %v426 = vpop.xlane.xlu0 %425
    %v427 = vsel %vm77, %v380, -inf
    %428 = vmax.xlane.f32.xlu0 %v427
    %v429 = vpop.xlane.xlu0 %428
    %v430 = vsel %vm77, %v383, -inf
    %431 = vmax.xlane.f32.xlu0 %v430
    %v432 = vpop.xlane.xlu0 %431
    %v433 = vsel %vm77, %v386, -inf
    %434 = vmax.xlane.f32.xlu0 %v433
    %v435 = vpop.xlane.xlu0 %434
    %v436 = vsel %vm77, %v389, -inf
    %437 = vmax.xlane.f32.xlu0 %v436
    %v438 = vpop.xlane.xlu0 %437
    %v439 = vsel %vm77, %v392, -inf
    %440 = vmax.xlane.f32.xlu0 %v439
    %v441 = vpop.xlane.xlu0 %440
    %v442 = vsel %vm77, %v395, -inf
    %443 = vmax.xlane.f32.xlu0 %v442
    %v444 = vpop.xlane.xlu0 %443
    %v445 = vsel %vm77, %v398, -inf
    %446 = vmax.xlane.f32.xlu0 %v445
    %v447 = vpop.xlane.xlu0 %446
    %v448 = vsel %vm77, %v401, -inf
    %449 = vmax.xlane.f32.xlu0 %v448
    %v450 = vpop.xlane.xlu0 %449
    %v451 = vsub.f32 %v356, %v405
    %v452 = vsub.f32 %v359, %v408
    %v453 = vsub.f32 %v362, %v411
    %v454 = vsub.f32 %v365, %v414
    %v455 = vsub.f32 %v368, %v417
    %v456 = vsub.f32 %v371, %v420
    %v457 = vsub.f32 %v374, %v423
    %v458 = vsub.f32 %v377, %v426
    %v459 = vsub.f32 %v380, %v429
    %v460 = vsub.f32 %v383, %v432
    %v461 = vsub.f32 %v386, %v435
    %v462 = vsub.f32 %v389, %v438
    %v463 = vsub.f32 %v392, %v441
    %v464 = vsub.f32 %v395, %v444
    %v465 = vsub.f32 %v398, %v447
    %v466 = vsub.f32 %v401, %v450
    %v467 = vmul.f32 %v451, 1.442695
    %v468 = vpow.pop %v467
    %v469 = vmul.f32 %v452, 1.442695
    %v470 = vpow.pop %v469
    %v471 = vmul.f32 %v453, 1.442695
    %v472 = vpow.pop %v471
    %v473 = vmul.f32 %v454, 1.442695
    %v474 = vpow.pop %v473
    %v475 = vmul.f32 %v455, 1.442695
    %v476 = vpow.pop %v475
    %v477 = vmul.f32 %v456, 1.442695
    %v478 = vpow.pop %v477
    %v479 = vmul.f32 %v457, 1.442695
    %v480 = vpow.pop %v479
    %v481 = vmul.f32 %v458, 1.442695
    %v482 = vpow.pop %v481
    %v483 = vmul.f32 %v459, 1.442695
    %v484 = vpow.pop %v483
    %v485 = vmul.f32 %v460, 1.442695
    %v486 = vpow.pop %v485
    %v487 = vmul.f32 %v461, 1.442695
    %v488 = vpow.pop %v487
    %v489 = vmul.f32 %v462, 1.442695
    %v490 = vpow.pop %v489
    %v491 = vmul.f32 %v463, 1.442695
    %v492 = vpow.pop %v491
    %v493 = vmul.f32 %v464, 1.442695
    %v494 = vpow.pop %v493
    %v495 = vmul.f32 %v465, 1.442695
    %v496 = vpow.pop %v495
    %v497 = vmul.f32 %v466, 1.442695
    %v498 = vpow.pop %v497
    %v499 = vsel %vm77, %v468, 0.0
    %500 = vadd.xlane.f32.xlu0 %v499
    %v501 = vpop.xlane.xlu0 %500
    %v502 = vsel %vm77, %v470, 0.0
    %503 = vadd.xlane.f32.xlu0 %v502
    %v504 = vpop.xlane.xlu0 %503
    %v505 = vsel %vm77, %v472, 0.0
    %506 = vadd.xlane.f32.xlu0 %v505
    %v507 = vpop.xlane.xlu0 %506
    %v508 = vsel %vm77, %v474, 0.0
    %509 = vadd.xlane.f32.xlu0 %v508
    %v510 = vpop.xlane.xlu0 %509
    %v511 = vsel %vm77, %v476, 0.0
    %512 = vadd.xlane.f32.xlu0 %v511
    %v513 = vpop.xlane.xlu0 %512
    %v514 = vsel %vm77, %v478, 0.0
    %515 = vadd.xlane.f32.xlu0 %v514
    %v516 = vpop.xlane.xlu0 %515
    %v517 = vsel %vm77, %v480, 0.0
    %518 = vadd.xlane.f32.xlu0 %v517
    %v519 = vpop.xlane.xlu0 %518
    %v520 = vsel %vm77, %v482, 0.0
    %521 = vadd.xlane.f32.xlu0 %v520
    %v522 = vpop.xlane.xlu0 %521
    %v523 = vsel %vm77, %v484, 0.0
    %524 = vadd.xlane.f32.xlu0 %v523
    %v525 = vpop.xlane.xlu0 %524
    %v526 = vsel %vm77, %v486, 0.0
    %527 = vadd.xlane.f32.xlu0 %v526
    %v528 = vpop.xlane.xlu0 %527
    %v529 = vsel %vm77, %v488, 0.0
    %530 = vadd.xlane.f32.xlu0 %v529
    %v531 = vpop.xlane.xlu0 %530
    %v532 = vsel %vm77, %v490, 0.0
    %533 = vadd.xlane.f32.xlu0 %v532
    %v534 = vpop.xlane.xlu0 %533
    %v535 = vsel %vm77, %v492, 0.0
    %536 = vadd.xlane.f32.xlu0 %v535
    %v537 = vpop.xlane.xlu0 %536
    %v538 = vsel %vm77, %v494, 0.0
    %539 = vadd.xlane.f32.xlu0 %v538
    %v540 = vpop.xlane.xlu0 %539
    %v541 = vsel %vm77, %v496, 0.0
    %542 = vadd.xlane.f32.xlu0 %v541
    %v543 = vpop.xlane.xlu0 %542
    %v544 = vsel %vm77, %v498, 0.0
    %545 = vadd.xlane.f32.xlu0 %v544
    %v546 = vpop.xlane.xlu0 %545
    %v547 = vrcp.pop %v501
    %v548 = vrcp.pop %v504
    %v549 = vrcp.pop %v507
    %v550 = vrcp.pop %v510
    %v551 = vrcp.pop %v513
    %v552 = vrcp.pop %v516
    %v553 = vrcp.pop %v519
    %v554 = vrcp.pop %v522
    %v555 = vrcp.pop %v525
    %v556 = vrcp.pop %v528
    %v557 = vrcp.pop %v531
    %v558 = vrcp.pop %v534
    %v559 = vrcp.pop %v537
    %v560 = vrcp.pop %v540
    %v561 = vrcp.pop %v543
    %v562 = vrcp.pop %v546
    %v563 = vmul.f32 %v468, %v547
    %v564 = vmul.f32 %v470, %v548
    %v565 = vmul.f32 %v472, %v549
    %v566 = vmul.f32 %v474, %v550
    %v567 = vmul.f32 %v476, %v551
    %v568 = vmul.f32 %v478, %v552
    %v569 = vmul.f32 %v480, %v553
    %v570 = vmul.f32 %v482, %v554
    %v571 = vmul.f32 %v484, %v555
    %v572 = vmul.f32 %v486, %v556
    %v573 = vmul.f32 %v488, %v557
    %v574 = vmul.f32 %v490, %v558
    %v575 = vmul.f32 %v492, %v559
    %v576 = vmul.f32 %v494, %v560
    %v577 = vmul.f32 %v496, %v561
    %v578 = vmul.f32 %v498, %v562
    %579 = vrot.lane.b32.xlu0 %v207, 64
    %v580 = vpop.permute.xlu0 %579
    %581 = vrot.lane.b32.xlu0 %v210, 64
    %v582 = vpop.permute.xlu0 %581
    %583 = vrot.lane.b32.xlu0 %v213, 64
    %v584 = vpop.permute.xlu0 %583
    %585 = vrot.lane.b32.xlu0 %v216, 64
    %v586 = vpop.permute.xlu0 %585
    %v592 = vsel %vm77, %v563, 0
    %v595 = vsel %vm77, %v564, 0
    %v598 = vsel %vm77, %v565, 0
    %v601 = vsel %vm77, %v566, 0
    %v604 = vsel %vm77, %v567, 0
    %v607 = vsel %vm77, %v568, 0
    %v610 = vsel %vm77, %v569, 0
    %v613 = vsel %vm77, %v570, 0
    %v616 = vsel %vm77, %v571, 0
    %v619 = vsel %vm77, %v572, 0
    %v622 = vsel %vm77, %v573, 0
    %v625 = vsel %vm77, %v574, 0
    %v628 = vsel %vm77, %v575, 0
    %v631 = vsel %vm77, %v576, 0
    %v634 = vsel %vm77, %v577, 0
    %v637 = vsel %vm77, %v578, 0
    %639 = vmatpush.msra.mxu0 0.0
    %640 = vmatpush.msra.mxu0 0.0
    %641 = vmatpush.msra.mxu0 0.0
    %642 = vmatpush.msra.mxu0 0.0
    %643 = vmatpush.msra.mxu0 0.0
    %644 = vmatpush.msra.mxu0 0.0
    %645 = vmatpush.msra.mxu0 0.0
    %646 = vmatpush.msra.mxu0 0.0
    %647 = vmatpush.msra.mxu0 0.0
    %648 = vmatpush.msra.mxu0 0.0
    %649 = vmatpush.msra.mxu0 0.0
    %650 = vmatpush.msra.mxu0 0.0
    %651 = vmatpush.msra.mxu0 %v586
    %652 = vmatpush.msra.mxu0 %v584
    %653 = vmatpush.msra.mxu0 %v582
    %654 = vmatpush.msra.mxu0 %v580
    %655 = vmatmul.f32.gmra.mxu0 %v592
    %v656 = vpop.f32.mrf.mxu0
    %v657 = vadd.f32 0.0, %v656
    %658 = vmatmul.f32.gmra.mxu0 %v595
    %v659 = vpop.f32.mrf.mxu0
    %v660 = vadd.f32 0.0, %v659
    %661 = vmatmul.f32.gmra.mxu0 %v598
    %v662 = vpop.f32.mrf.mxu0
    %v663 = vadd.f32 0.0, %v662
    %664 = vmatmul.f32.gmra.mxu0 %v601
    %v665 = vpop.f32.mrf.mxu0
    %v666 = vadd.f32 0.0, %v665
    %667 = vmatmul.f32.gmra.mxu0 %v604
    %v668 = vpop.f32.mrf.mxu0
    %v669 = vadd.f32 0.0, %v668
    %670 = vmatmul.f32.gmra.mxu0 %v607
    %v671 = vpop.f32.mrf.mxu0
    %v672 = vadd.f32 0.0, %v671
    %673 = vmatmul.f32.gmra.mxu0 %v610
    %v674 = vpop.f32.mrf.mxu0
    %v675 = vadd.f32 0.0, %v674
    %676 = vmatmul.f32.gmra.mxu0 %v613
    %v677 = vpop.f32.mrf.mxu0
    %v678 = vadd.f32 0.0, %v677
    %679 = vmatmul.f32.gmra.mxu0 %v616
    %v680 = vpop.f32.mrf.mxu0
    %v681 = vadd.f32 0.0, %v680
    %682 = vmatmul.f32.gmra.mxu0 %v619
    %v683 = vpop.f32.mrf.mxu0
    %v684 = vadd.f32 0.0, %v683
    %685 = vmatmul.f32.gmra.mxu0 %v622
    %v686 = vpop.f32.mrf.mxu0
    %v687 = vadd.f32 0.0, %v686
    %688 = vmatmul.f32.gmra.mxu0 %v625
    %v689 = vpop.f32.mrf.mxu0
    %v690 = vadd.f32 0.0, %v689
    %691 = vmatmul.f32.gmra.mxu0 %v628
    %v692 = vpop.f32.mrf.mxu0
    %v693 = vadd.f32 0.0, %v692
    %694 = vmatmul.f32.gmra.mxu0 %v631
    %v695 = vpop.f32.mrf.mxu0
    %v696 = vadd.f32 0.0, %v695
    %697 = vmatmul.f32.gmra.mxu0 %v634
    %v698 = vpop.f32.mrf.mxu0
    %v699 = vadd.f32 0.0, %v698
    %700 = vmatmul.f32.gmra.mxu0 %v637
    %v701 = vpop.f32.mrf.mxu0
    %v702 = vadd.f32 0.0, %v701
    %703 = vdwg.mxu0
    %v704 = vmul.f32 %v657, %v222
    %v705 = vmul.f32 %v660, %v223
    %v706 = vmul.f32 %v663, %v224
    %v707 = vmul.f32 %v666, %v225
    %v708 = vmul.f32 %v669, %v226
    %v709 = vmul.f32 %v672, %v227
    %v710 = vmul.f32 %v675, %v228
    %v711 = vmul.f32 %v678, %v229
    %v712 = vmul.f32 %v681, %v230
    %v713 = vmul.f32 %v684, %v231
    %v714 = vmul.f32 %v687, %v232
    %v715 = vmul.f32 %v690, %v233
    %v716 = vmul.f32 %v693, %v234
    %v717 = vmul.f32 %v696, %v235
    %v718 = vmul.f32 %v699, %v236
    %v719 = vmul.f32 %v702, %v237
    %v720 = vadd.f32 %v704, %v708
    %v721 = vadd.f32 %v705, %v709
    %v722 = vadd.f32 %v706, %v710
    %v723 = vadd.f32 %v707, %v711
    %v724 = vadd.f32 %v720, %v712
    %v725 = vadd.f32 %v721, %v713
    %v726 = vadd.f32 %v722, %v714
    %v727 = vadd.f32 %v723, %v715
    %v728 = vadd.f32 %v724, %v716
    %v729 = vadd.f32 %v725, %v717
    %v730 = vadd.f32 %v726, %v718
    %v731 = vadd.f32 %v727, %v719
    %v732 = vld [vmem:[#allocation2] sm:$0xff]
    %v733 = vld [vmem:[#allocation2 + $0x8] sm:$0xff]
    %v734 = vld [vmem:[#allocation2 + $0x10] sm:$0xff]
    %v735 = vld [vmem:[#allocation2 + $0x18] sm:$0xff]
    %v737 = vsel %vm77, %v728, 0
    %v740 = vsel %vm77, %v729, 0
    %v743 = vsel %vm77, %v730, 0
    %v746 = vsel %vm77, %v731, 0
    %748 = vmatpush.msra.mxu0 0.0
    %749 = vmatpush.msra.mxu0 0.0
    %750 = vmatpush.msra.mxu0 0.0
    %751 = vmatpush.msra.mxu0 0.0
    %752 = vmatpush.msra.mxu0 0.0
    %753 = vmatpush.msra.mxu0 0.0
    %754 = vmatpush.msra.mxu0 0.0
    %755 = vmatpush.msra.mxu0 0.0
    %756 = vmatpush.msra.mxu0 0.0
    %757 = vmatpush.msra.mxu0 0.0
    %758 = vmatpush.msra.mxu0 0.0
    %759 = vmatpush.msra.mxu0 0.0
    %760 = vmatpush.msra.mxu0 %v735
    %761 = vmatpush.msra.mxu0 %v734
    %762 = vmatpush.msra.mxu0 %v733
    %763 = vmatpush.msra.mxu0 %v732
    %764 = vmatmul.f32.gmra.mxu0 %v737
    %v765 = vpop.f32.mrf.mxu0
    %v766 = vadd.f32 0.0, %v765
    %767 = vmatmul.f32.gmra.mxu0 %v740
    %v768 = vpop.f32.mrf.mxu0
    %v769 = vadd.f32 0.0, %v768
    %770 = vmatmul.f32.gmra.mxu0 %v743
    %v771 = vpop.f32.mrf.mxu0
    %v772 = vadd.f32 0.0, %v771
    %773 = vmatmul.f32.gmra.mxu0 %v746
    %v774 = vpop.f32.mrf.mxu0
    %v775 = vadd.f32 0.0, %v774
    %776 = vdwg.mxu0
    %v777 = vadd.f32 %v73, %v766
    %v778 = vadd.f32 %v74, %v769
    %v779 = vadd.f32 %v75, %v772
    %v780 = vadd.f32 %v76, %v775
    %v781 = vsel %vm77, %v777, 0.0
    %782 = vadd.xlane.f32.xlu0 %v781
    %v783 = vpop.xlane.xlu0 %782
    %v784 = vsel %vm77, %v778, 0.0
    %785 = vadd.xlane.f32.xlu0 %v784
    %v786 = vpop.xlane.xlu0 %785
    %v787 = vsel %vm77, %v779, 0.0
    %788 = vadd.xlane.f32.xlu0 %v787
    %v789 = vpop.xlane.xlu0 %788
    %v790 = vsel %vm77, %v780, 0.0
    %791 = vadd.xlane.f32.xlu0 %v790
    %v792 = vpop.xlane.xlu0 %791
    %v793 = vmul.f32 %v783, %v96
    %v794 = vmul.f32 %v786, %v96
    %v795 = vmul.f32 %v789, %v96
    %v796 = vmul.f32 %v792, %v96
    %v797 = vsub.f32 %v777, %v793
    %v798 = vsub.f32 %v778, %v794
    %v799 = vsub.f32 %v779, %v795
    %v800 = vsub.f32 %v780, %v796
    %v801 = vmul.f32 %v797, %v797
    %v802 = vmul.f32 %v798, %v798
    %v803 = vmul.f32 %v799, %v799
    %v804 = vmul.f32 %v800, %v800
    %v805 = vsel %vm77, %v801, 0.0
    %806 = vadd.xlane.f32.xlu0 %v805
    %v807 = vpop.xlane.xlu0 %806
    %v808 = vsel %vm77, %v802, 0.0
    %809 = vadd.xlane.f32.xlu0 %v808
    %v810 = vpop.xlane.xlu0 %809
    %v811 = vsel %vm77, %v803, 0.0
    %812 = vadd.xlane.f32.xlu0 %v811
    %v813 = vpop.xlane.xlu0 %812
    %v814 = vsel %vm77, %v804, 0.0
    %815 = vadd.xlane.f32.xlu0 %v814
    %v816 = vpop.xlane.xlu0 %815
    %v817 = vmul.f32 %v807, %v96
    %v818 = vmul.f32 %v810, %v96
    %v819 = vmul.f32 %v813, %v96
    %v820 = vmul.f32 %v816, %v96
    %v821 = vadd.f32 %v817, 1e-05
    %v822 = vadd.f32 %v818, 1e-05
    %v823 = vadd.f32 %v819, 1e-05
    %v824 = vadd.f32 %v820, 1e-05
    %v825 = vrsqrt.pop %v821
    %v826 = vmul.f32 %v825, %v821
    %v827 = vmul.f32 %v826, %v825
    %v828 = vmul.f32 0.5, %v827
    %v829 = vsub.f32 1.5, %v828
    %v830 = vmul.f32 %v825, %v829
    %vm831 = vweird.f32 %v821
    %vm832 = vweird.f32 %v825
    %vm833 = vmor %vm831, %vm832
    %v834 = vsel %vm833, %v825, %v830
    %v835 = vrsqrt.pop %v822
    %v836 = vmul.f32 %v835, %v822
    %v837 = vmul.f32 %v836, %v835
    %v838 = vmul.f32 0.5, %v837
    %v839 = vsub.f32 1.5, %v838
    %v840 = vmul.f32 %v835, %v839
    %vm841 = vweird.f32 %v822
    %vm842 = vweird.f32 %v835
    %vm843 = vmor %vm841, %vm842
    %v844 = vsel %vm843, %v835, %v840
    %v845 = vrsqrt.pop %v823
    %v846 = vmul.f32 %v845, %v823
    %v847 = vmul.f32 %v846, %v845
    %v848 = vmul.f32 0.5, %v847
    %v849 = vsub.f32 1.5, %v848
    %v850 = vmul.f32 %v845, %v849
    %vm851 = vweird.f32 %v823
    %vm852 = vweird.f32 %v845
    %vm853 = vmor %vm851, %vm852
    %v854 = vsel %vm853, %v845, %v850
    %v855 = vrsqrt.pop %v824
    %v856 = vmul.f32 %v855, %v824
    %v857 = vmul.f32 %v856, %v855
    %v858 = vmul.f32 0.5, %v857
    %v859 = vsub.f32 1.5, %v858
    %v860 = vmul.f32 %v855, %v859
    %vm861 = vweird.f32 %v824
    %vm862 = vweird.f32 %v855
    %vm863 = vmor %vm861, %vm862
    %v864 = vsel %vm863, %v855, %v860
    %v865 = vmul.f32 %v797, %v834
    %v866 = vmul.f32 %v798, %v844
    %v867 = vmul.f32 %v799, %v854
    %v868 = vmul.f32 %v800, %v864
    %v869 = vld [vmem:[#allocation4] sm:$0xff]
    %v870 = vld [vmem:[#allocation4 + $0x8] sm:$0xff]
    %v871 = vld [vmem:[#allocation4 + $0x10] sm:$0xff]
    %v872 = vld [vmem:[#allocation4 + $0x18] sm:$0xff]
    %v874 = vsel %vm77, %v865, 0
    %v877 = vsel %vm77, %v866, 0
    %v880 = vsel %vm77, %v867, 0
    %v883 = vsel %vm77, %v868, 0
    %885 = vmatpush.msra.mxu0 0.0
    %886 = vmatpush.msra.mxu0 0.0
    %887 = vmatpush.msra.mxu0 0.0
    %888 = vmatpush.msra.mxu0 0.0
    %889 = vmatpush.msra.mxu0 0.0
    %890 = vmatpush.msra.mxu0 0.0
    %891 = vmatpush.msra.mxu0 0.0
    %892 = vmatpush.msra.mxu0 0.0
    %893 = vmatpush.msra.mxu0 0.0
    %894 = vmatpush.msra.mxu0 0.0
    %895 = vmatpush.msra.mxu0 0.0
    %896 = vmatpush.msra.mxu0 0.0
    %897 = vmatpush.msra.mxu0 %v872
    %898 = vmatpush.msra.mxu0 %v871
    %899 = vmatpush.msra.mxu0 %v870
    %900 = vmatpush.msra.mxu0 %v869
    %901 = vmatmul.f32.gmra.mxu0 %v874
    %v902 = vpop.f32.mrf.mxu0
    %v903 = vadd.f32 0.0, %v902
    %904 = vmatmul.f32.gmra.mxu0 %v877
    %v905 = vpop.f32.mrf.mxu0
    %v906 = vadd.f32 0.0, %v905
    %907 = vmatmul.f32.gmra.mxu0 %v880
    %v908 = vpop.f32.mrf.mxu0
    %v909 = vadd.f32 0.0, %v908
    %910 = vmatmul.f32.gmra.mxu0 %v883
    %v911 = vpop.f32.mrf.mxu0
    %v912 = vadd.f32 0.0, %v911
    %913 = vdwg.mxu0
    %v914 = vmul.f32 %v903, 0.5
    %v915 = vmul.f32 %v906, 0.5
    %v916 = vmul.f32 %v909, 0.5
    %v917 = vmul.f32 %v912, 0.5
    %v918 = vmul.f32 %v903, 0.70710677
    %v919 = vmul.f32 %v906, 0.70710677
    %v920 = vmul.f32 %v909, 0.70710677
    %v921 = vmul.f32 %v912, 0.70710677
    %v922 = vmul.f32 %v918, %v918
    %v923 = vmin.f32 16.0, %v922
    %v924 = vmul.f32 %v923, 2.1237322e-06
    %v925 = vadd.f32 %v924, 0.00028619796
    %v926 = vmul.f32 %v923, %v925
    %v927 = vadd.f32 %v926, 0.0036580483
    %v928 = vmul.f32 %v923, %v927
    %v929 = vadd.f32 %v928, 0.05243302
    %v930 = vmul.f32 %v923, %v929
    %v931 = vadd.f32 %v930, 0.18741608
    %v932 = vmul.f32 %v923, %v931
    %v933 = vadd.f32 %v932, 1.1283791
    %v934 = vmul.f32 %v918, %v933
    %v935 = vmul.f32 %v923, 3.8918573e-05
    %v936 = vadd.f32 %v935, 0.001143296
    %v937 = vmul.f32 %v923, %v936
    %v938 = vadd.f32 %v937, 0.014752088
    %v939 = vmul.f32 %v923, %v938
    %v940 = vadd.f32 %v939, 0.112945676
    %v941 = vmul.f32 %v923, %v940
    %v942 = vadd.f32 %v941, 0.4994258
    %v943 = vmul.f32 %v923, %v942
    %v944 = vadd.f32 %v943, 1.0
    %v945 = vrcp.pop %v944
    %v946 = vmul.f32 %v944, %v945
    %v947 = vsub.f32 1.0, %v946
    %v948 = vmul.f32 %v945, %v947
    %v949 = vadd.f32 %v945, %v948
    %vm950 = vweird.f32 %v944
    %vm951 = vweird.f32 %v945
    %vm952 = vmor %vm950, %vm951
    %v953 = vsel %vm952, %v945, %v949
    %v954 = vand.u32 2147483647, %v944
    %vm955 = vcmp.eq.f32.partialorder %v954, 8.507059e+37
    %v956 = vand.u32 %v944, 2147483648
    %v957 = vor.u32 1.1754944e-38, %v956
    %v958 = vsel %vm955, %v957, %v953
    %v959 = vmul.f32 %v934, %v958
    %v960 = vmin.f32 %v959, 1.0
    %v961 = vmax.f32 %v960, -1.0
    %v962 = vmul.f32 %v919, %v919
    %v963 = vmin.f32 16.0, %v962
    %v964 = vmul.f32 %v963, 2.1237322e-06
    %v965 = vadd.f32 %v964, 0.00028619796
    %v966 = vmul.f32 %v963, %v965
    %v967 = vadd.f32 %v966, 0.0036580483
    %v968 = vmul.f32 %v963, %v967
    %v969 = vadd.f32 %v968, 0.05243302
    %v970 = vmul.f32 %v963, %v969
    %v971 = vadd.f32 %v970, 0.18741608
    %v972 = vmul.f32 %v963, %v971
    %v973 = vadd.f32 %v972, 1.1283791
    %v974 = vmul.f32 %v919, %v973
    %v975 = vmul.f32 %v963, 3.8918573e-05
    %v976 = vadd.f32 %v975, 0.001143296
    %v977 = vmul.f32 %v963, %v976
    %v978 = vadd.f32 %v977, 0.014752088
    %v979 = vmul.f32 %v963, %v978
    %v980 = vadd.f32 %v979, 0.112945676
    %v981 = vmul.f32 %v963, %v980
    %v982 = vadd.f32 %v981, 0.4994258
    %v983 = vmul.f32 %v963, %v982
    %v984 = vadd.f32 %v983, 1.0
    %v985 = vrcp.pop %v984
    %v986 = vmul.f32 %v984, %v985
    %v987 = vsub.f32 1.0, %v986
    %v988 = vmul.f32 %v985, %v987
    %v989 = vadd.f32 %v985, %v988
    %vm990 = vweird.f32 %v984
    %vm991 = vweird.f32 %v985
    %vm992 = vmor %vm990, %vm991
    %v993 = vsel %vm992, %v985, %v989
    %v994 = vand.u32 2147483647, %v984
    %vm995 = vcmp.eq.f32.partialorder %v994, 8.507059e+37
    %v996 = vand.u32 %v984, 2147483648
    %v997 = vor.u32 1.1754944e-38, %v996
    %v998 = vsel %vm995, %v997, %v993
    %v999 = vmul.f32 %v974, %v998
    %v1000 = vmin.f32 %v999, 1.0
    %v1001 = vmax.f32 %v1000, -1.0
    %v1002 = vmul.f32 %v920, %v920
    %v1003 = vmin.f32 16.0, %v1002
    %v1004 = vmul.f32 %v1003, 2.1237322e-06
    %v1005 = vadd.f32 %v1004, 0.00028619796
    %v1006 = vmul.f32 %v1003, %v1005
    %v1007 = vadd.f32 %v1006, 0.0036580483
    %v1008 = vmul.f32 %v1003, %v1007
    %v1009 = vadd.f32 %v1008, 0.05243302
    %v1010 = vmul.f32 %v1003, %v1009
    %v1011 = vadd.f32 %v1010, 0.18741608
    %v1012 = vmul.f32 %v1003, %v1011
    %v1013 = vadd.f32 %v1012, 1.1283791
    %v1014 = vmul.f32 %v920, %v1013
    %v1015 = vmul.f32 %v1003, 3.8918573e-05
    %v1016 = vadd.f32 %v1015, 0.001143296
    %v1017 = vmul.f32 %v1003, %v1016
    %v1018 = vadd.f32 %v1017, 0.014752088
    %v1019 = vmul.f32 %v1003, %v1018
    %v1020 = vadd.f32 %v1019, 0.112945676
    %v1021 = vmul.f32 %v1003, %v1020
    %v1022 = vadd.f32 %v1021, 0.4994258
    %v1023 = vmul.f32 %v1003, %v1022
    %v1024 = vadd.f32 %v1023, 1.0
    %v1025 = vrcp.pop %v1024
    %v1026 = vmul.f32 %v1024, %v1025
    %v1027 = vsub.f32 1.0, %v1026
    %v1028 = vmul.f32 %v1025, %v1027
    %v1029 = vadd.f32 %v1025, %v1028
    %vm1030 = vweird.f32 %v1024
    %vm1031 = vweird.f32 %v1025
    %vm1032 = vmor %vm1030, %vm1031
    %v1033 = vsel %vm1032, %v1025, %v1029
    %v1034 = vand.u32 2147483647, %v1024
    %vm1035 = vcmp.eq.f32.partialorder %v1034, 8.507059e+37
    %v1036 = vand.u32 %v1024, 2147483648
    %v1037 = vor.u32 1.1754944e-38, %v1036
    %v1038 = vsel %vm1035, %v1037, %v1033
    %v1039 = vmul.f32 %v1014, %v1038
    %v1040 = vmin.f32 %v1039, 1.0
    %v1041 = vmax.f32 %v1040, -1.0
    %v1042 = vmul.f32 %v921, %v921
    %v1043 = vmin.f32 16.0, %v1042
    %v1044 = vmul.f32 %v1043, 2.1237322e-06
    %v1045 = vadd.f32 %v1044, 0.00028619796
    %v1046 = vmul.f32 %v1043, %v1045
    %v1047 = vadd.f32 %v1046, 0.0036580483
    %v1048 = vmul.f32 %v1043, %v1047
    %v1049 = vadd.f32 %v1048, 0.05243302
    %v1050 = vmul.f32 %v1043, %v1049
    %v1051 = vadd.f32 %v1050, 0.18741608
    %v1052 = vmul.f32 %v1043, %v1051
    %v1053 = vadd.f32 %v1052, 1.1283791
    %v1054 = vmul.f32 %v921, %v1053
    %v1055 = vmul.f32 %v1043, 3.8918573e-05
    %v1056 = vadd.f32 %v1055, 0.001143296
    %v1057 = vmul.f32 %v1043, %v1056
    %v1058 = vadd.f32 %v1057, 0.014752088
    %v1059 = vmul.f32 %v1043, %v1058
    %v1060 = vadd.f32 %v1059, 0.112945676
    %v1061 = vmul.f32 %v1043, %v1060
    %v1062 = vadd.f32 %v1061, 0.4994258
    %v1063 = vmul.f32 %v1043, %v1062
    %v1064 = vadd.f32 %v1063, 1.0
    %v1065 = vrcp.pop %v1064
    %v1066 = vmul.f32 %v1064, %v1065
    %v1067 = vsub.f32 1.0, %v1066
    %v1068 = vmul.f32 %v1065, %v1067
    %v1069 = vadd.f32 %v1065, %v1068
    %vm1070 = vweird.f32 %v1064
    %vm1071 = vweird.f32 %v1065
    %vm1072 = vmor %vm1070, %vm1071
    %v1073 = vsel %vm1072, %v1065, %v1069
    %v1074 = vand.u32 2147483647, %v1064
    %vm1075 = vcmp.eq.f32.partialorder %v1074, 8.507059e+37
    %v1076 = vand.u32 %v1064, 2147483648
    %v1077 = vor.u32 1.1754944e-38, %v1076
    %v1078 = vsel %vm1075, %v1077, %v1073
    %v1079 = vmul.f32 %v1054, %v1078
    %v1080 = vmin.f32 %v1079, 1.0
    %v1081 = vmax.f32 %v1080, -1.0
    %v1082 = vadd.f32 %v961, 1.0
    %v1083 = vadd.f32 %v1001, 1.0
    %v1084 = vadd.f32 %v1041, 1.0
    %v1085 = vadd.f32 %v1081, 1.0
    %v1086 = vmul.f32 %v914, %v1082
    %v1087 = vmul.f32 %v915, %v1083
    %v1088 = vmul.f32 %v916, %v1084
    %v1089 = vmul.f32 %v917, %v1085
    %v1090 = vld [vmem:[%s4] sm:$0xff]
    %v1091 = vld [vmem:[%s4 + $0x8] sm:$0xff]
    %v1092 = vld [vmem:[%s4 + $0x10] sm:$0xff]
    %v1093 = vld [vmem:[%s4 + $0x18] sm:$0xff]
    %v1094 = vld [vmem:[%s4 + $0x20] sm:$0xff]
    %v1095 = vld [vmem:[%s4 + $0x28] sm:$0xff]
    %v1096 = vld [vmem:[%s4 + $0x30] sm:$0xff]
    %v1097 = vld [vmem:[%s4 + $0x38] sm:$0xff]
    %v1098 = vld [vmem:[%s4 + $0x40] sm:$0xff]
    %v1099 = vld [vmem:[%s4 + $0x48] sm:$0xff]
    %v1100 = vld [vmem:[%s4 + $0x50] sm:$0xff]
    %v1101 = vld [vmem:[%s4 + $0x58] sm:$0xff]
    %v1102 = vld [vmem:[%s4 + $0x60] sm:$0xff]
    %v1103 = vld [vmem:[%s4 + $0x68] sm:$0xff]
    %v1104 = vld [vmem:[%s4 + $0x70] sm:$0xff]
    %v1105 = vld [vmem:[%s4 + $0x78] sm:$0xff]
    %1106 = vmatpush.msra.mxu0 %v1105
    %1107 = vmatpush.msra.mxu0 %v1104
    %1108 = vmatpush.msra.mxu0 %v1103
    %1109 = vmatpush.msra.mxu0 %v1102
    %1110 = vmatpush.msra.mxu0 %v1101
    %1111 = vmatpush.msra.mxu0 %v1100
    %1112 = vmatpush.msra.mxu0 %v1099
    %1113 = vmatpush.msra.mxu0 %v1098
    %1114 = vmatpush.msra.mxu0 %v1097
    %1115 = vmatpush.msra.mxu0 %v1096
    %1116 = vmatpush.msra.mxu0 %v1095
    %1117 = vmatpush.msra.mxu0 %v1094
    %1118 = vmatpush.msra.mxu0 %v1093
    %1119 = vmatpush.msra.mxu0 %v1092
    %1120 = vmatpush.msra.mxu0 %v1091
    %1121 = vmatpush.msra.mxu0 %v1090
    %1122 = vmatmul.f32.gmra.mxu0 %v1086
    %v1123 = vpop.f32.mrf.mxu0
    %v1124 = vadd.f32 0.0, %v1123
    %1125 = vmatmul.f32.gmra.mxu0 %v1087
    %v1126 = vpop.f32.mrf.mxu0
    %v1127 = vadd.f32 0.0, %v1126
    %1128 = vmatmul.f32.gmra.mxu0 %v1088
    %v1129 = vpop.f32.mrf.mxu0
    %v1130 = vadd.f32 0.0, %v1129
    %1131 = vmatmul.f32.gmra.mxu0 %v1089
    %v1132 = vpop.f32.mrf.mxu0
    %v1133 = vadd.f32 0.0, %v1132
    %1134 = vdwg.mxu0
    %v1135 = vadd.f32 %v777, %v1124
    %v1136 = vadd.f32 %v778, %v1127
    %v1137 = vadd.f32 %v779, %v1130
    %v1138 = vadd.f32 %v780, %v1133
    %1139 = vst.msk [vmem:[%s7] sm:$0xff] %vm77, %v1135
    %1140 = vst.msk [vmem:[%s7 + $0x8] sm:$0xff] %vm77, %v1136
    %1141 = vst.msk [vmem:[%s7 + $0x10] sm:$0xff] %vm77, %v1137
    %1142 = vst.msk [vmem:[%s7 + $0x18] sm:$0xff] %vm77, %v1138
    // Predicated region
    $region42: #{gpt_block.1} parent=1 // pred_check
      _
    $region43: #{gpt_block.1} parent=1 // pred_check_branch
      %1144 = sbr.rel (0) target = $region45
    $region44: #{gpt_block.1} parent=1 // pred_region
      _
    $region45: #{gpt_block.1} parent=1 // pred_fallthru
      _
    // Predicated region
    $region46: #{gpt_block.1} parent=1 // pred_check
      _
    $region47: #{gpt_block.1} parent=1 // pred_check_branch
      %1146 = sbr.rel (0) target = $region49
    $region48: #{gpt_block.1} parent=1 // pred_region
      _
    $region49: #{gpt_block.1} parent=1 // pred_fallthru
      _
    %1147 = vsyncpa [#allocation3], 1
    %1148 = vsyncpa [#allocation5], 1

</llo_original>
